<compile_context>
chip_gen: v7x
topology: tpu7x:2x2x1
jax: 0.10.0
libtpu: 0.0.40
codegen_flags: <defaults>
</compile_context>

<pallas_src>
import functools

import jax
import jax.numpy as jnp
from jax.experimental import pallas as pl
from jax.experimental.pallas import tpu as pltpu


def _round_up(x, m):
    return ((x + m - 1) // m) * m


def _mlp_time_kernel(x_ref, w_ref, b_ref, *rest, apply_mask, scale, compute_dtype):
    """One row-tile of Dropout(ReLU(x @ W + b))."""
    if apply_mask:
        mask_ref, o_ref = rest
    else:
        (o_ref,) = rest

    x = x_ref[...].astype(compute_dtype)        # no-op when dtypes already match
    w = w_ref[...]                              # pre-cast in wrapper, VMEM-resident

    # MXU matmul with f32 accumulation; bias add + ReLU on the VPU in f32.
    y = jnp.dot(x, w, preferred_element_type=jnp.float32)
    y = y + b_ref[...]                          # bias already f32
    y = jnp.maximum(y, 0.0)

    if apply_mask:
        # Inverted dropout: mask holds exact {0, 1} in bf16; scale applied in f32.
        y = y * (mask_ref[...].astype(jnp.float32) * jnp.float32(scale))

    o_ref[...] = y.astype(o_ref.dtype)


def mlp_time(x, w, b, *, drop_rate=0.1, training=False, seed=0,
             compute_dtype=None, out_dtype=None, block_rows=512):
    """x: [B, C, in_features]; w: [in_features, hidden]; b: [hidden].

    Returns [B, C, hidden] = Dropout(ReLU(x @ w + b)).
    """
    B, C, in_features = x.shape
    hidden = w.shape[1]
    M = B * C

    cd = jnp.dtype(compute_dtype) if compute_dtype is not None else jnp.dtype(x.dtype)
    out_dtype = jnp.dtype(out_dtype) if out_dtype is not None else jnp.dtype(x.dtype)
    use_mask = bool(training) and float(drop_rate) > 0.0
    scale = (1.0 / (1.0 - float(drop_rate))) if use_mask else 1.0

    # Lane-dense output: pad hidden to a multiple of 128 (sliced off afterwards).
    hidden_p = _round_up(hidden, 128)

    MIB = 1024 * 1024
    x_bytes = jnp.dtype(x.dtype).itemsize
    o_bytes = out_dtype.itemsize
    w_bytes = cd.itemsize
    mask_bytes = jnp.dtype(jnp.bfloat16).itemsize if use_mask else 0

    # Resident operands (single-buffered via pl.Buffered(1)): W in compute dtype, bias f32.
    resident_bytes = in_features * hidden_p * w_bytes + hidden_p * 4
    # Streamed bytes per output row (double-buffered): x tile, out tile, optional mask tile.
    per_row_bytes = 2 * (in_features * x_bytes + hidden_p * (o_bytes + mask_bytes))

    # Conservative budget that is safe even on v7x's 64 MiB physical VMEM (leaves
    # headroom for compiler-internal scratch). Row tiles beyond ~512 plateau at the
    # HBM roofline, so this costs nothing on v5e/v6e's 128 MiB VMEM.
    total_budget = 36 * MIB
    block_rows = max(8, (int(block_rows) // 8) * 8)
    avail = max(total_budget - resident_bytes, 8 * per_row_bytes)
    tm_fit = max(8, (avail // per_row_bytes) // 8 * 8)      # largest fitting tile
    tm = min(block_rows, tm_fit)
    tm = min(tm, _round_up(M, 8))                           # never exceed the problem
    # Keep >= ~4 grid steps when M allows it: DMA/compute overlap + work for both
    # TensorCores on v7x's "parallel" axis.  TODO(synk): if profiling shows the
    # "parallel" axis does not shard across v7x cores, switch to pltpu.CORE_PARALLEL.
    if M >= 4 * 8:
        tm = min(tm, max(8, (M // 4) // 8 * 8))
    M_p = _round_up(max(M, tm), tm)

    # Flatten / pad inputs; pre-cast resident operands ONCE here (no per-tile casts).
    x2d = x.reshape(M, in_features)
    if M_p != M:
        x2d = jnp.pad(x2d, ((0, M_p - M), (0, 0)))
    w_p = w if hidden_p == hidden else jnp.pad(w, ((0, 0), (0, hidden_p - hidden)))
    w_p = w_p.astype(cd)
    b_p = b if hidden_p == hidden else jnp.pad(b, ((0, hidden_p - hidden),))
    b2d = b_p.reshape(1, hidden_p).astype(jnp.float32)      # bias added in f32 accum

    inputs = [x2d, w_p, b2d]
    in_specs = [
        pl.BlockSpec((tm, in_features), lambda i: (i, 0)),                     # streamed
        pl.BlockSpec((in_features, hidden_p), lambda i: (0, 0),
                     pipeline_mode=pl.Buffered(buffer_count=1)),               # resident W
        pl.BlockSpec((1, hidden_p), lambda i: (0, 0),
                     pipeline_mode=pl.Buffered(buffer_count=1)),               # resident b
    ]
    if use_mask:
        # TODO(synk): distribution-equivalent dropout only; cannot bit-match torch's RNG.
        keep = jax.random.bernoulli(jax.random.PRNGKey(int(seed)),
                                    1.0 - float(drop_rate), (M_p, hidden_p))
        inputs.append(keep.astype(jnp.bfloat16))
        in_specs.append(pl.BlockSpec((tm, hidden_p), lambda i: (i, 0)))        # streamed

    kernel = functools.partial(
        _mlp_time_kernel,
        apply_mask=use_mask,
        scale=scale,
        compute_dtype=cd,
    )

    vmem_need = tm * per_row_bytes + resident_bytes
    vmem_limit = int(max(16 * MIB, vmem_need + 4 * MIB))    # ~<=40 MiB in practice (v7x-safe)

    cost = pl.CostEstimate(
        flops=2 * M_p * in_features * hidden_p,
        transcendentals=0,
        bytes_accessed=int(M_p * in_features * x_bytes
                           + in_features * hidden_p * w_bytes
                           + hidden_p * 4
                           + M_p * hidden_p * (o_bytes + mask_bytes)),
    )

    out2d = pl.pallas_call(
        kernel,
        out_shape=jax.ShapeDtypeStruct((M_p, hidden_p), out_dtype),
        grid_spec=pltpu.PrefetchScalarGridSpec(
            num_scalar_prefetch=0,
            grid=(M_p // tm,),
            in_specs=in_specs,
            out_specs=pl.BlockSpec((tm, hidden_p), lambda i: (i, 0)),
        ),
        compiler_params=pltpu.CompilerParams(
            dimension_semantics=("parallel",),   # independent row tiles
            vmem_limit_bytes=vmem_limit,
        ),
        cost_estimate=cost,
    )(*inputs)

    out2d = out2d[:M, :hidden]
    return out2d.reshape(B, C, hidden)


def init_params(key, in_features, hidden_features, dtype=jnp.float32):
    """Deterministic init mimicking nn.Linear's default (uniform +/- 1/sqrt(in))."""
    k_w, k_b = jax.random.split(key)
    bound = 1.0 / (in_features ** 0.5)
    # Stored already transposed to [in_features, hidden] for the kernel.
    w = jax.random.uniform(k_w, (in_features, hidden_features), dtype,
                           minval=-bound, maxval=bound)
    b = jax.random.uniform(k_b, (hidden_features,), dtype,
                           minval=-bound, maxval=bound)
    return w, b


if __name__ == "__main__":
    # Small shapes: batch=2, channels=4, seq(time)=8 -> in_features=8, hidden=32
    B, C, T = 2, 4, 8
    in_features = T
    hidden_features = 32

    key = jax.random.PRNGKey(0)
    k_x, k_p = jax.random.split(key)
    x = jax.random.normal(k_x, (B, C, in_features), dtype=jnp.float32)
    w, b = init_params(k_p, in_features, hidden_features)

    ref = jnp.maximum(
        jnp.einsum("bct,th->bch", x, w, precision=jax.lax.Precision.HIGHEST) + b, 0.0)

    # 1) Eval-mode forward (dropout identity), f32.
    out = jax.block_until_ready(mlp_time(x, w, b, drop_rate=0.1, training=False))
    assert out.shape == (B, C, hidden_features)
    assert jnp.allclose(out, ref, atol=1e-4, rtol=1e-4)

    # 2) bf16 weights/compute + bf16 output (HBM-bound fast path) — loose check.
    out_bf16 = jax.block_until_ready(
        mlp_time(x, w, b, drop_rate=0.1, training=False,
                 compute_dtype=jnp.bfloat16, out_dtype=jnp.bfloat16))
    assert out_bf16.dtype == jnp.bfloat16
    assert jnp.allclose(out_bf16.astype(jnp.float32), ref, atol=5e-2, rtol=5e-2)

    # 3) Training-mode forward: kept entries equal scaled ReLU output, dropped are 0.
    p = 0.1
    out_tr = jax.block_until_ready(
        mlp_time(x, w, b, drop_rate=p, training=True, seed=1234))
    scaled_ref = ref * (1.0 / (1.0 - p))
    recon = jnp.where(out_tr == 0.0, scaled_ref, out_tr)
    assert jnp.allclose(recon, scaled_ref, atol=1e-3, rtol=1e-3)

    print("KERNEL_OK")
</pallas_src>

<mosaic_0001>
module attributes {stable_mosaic.version = 11 : i64} {
  func.func @_mlp_time_kernel(%arg0: i32, %arg1: memref<8x8xf32, #tpu.memory_space<vmem>>, %arg2: memref<8x128xf32, #tpu.memory_space<vmem>>, %arg3: memref<1x128xf32, #tpu.memory_space<vmem>>, %arg4: memref<8x128xf32, #tpu.memory_space<vmem>>) attributes {dimension_semantics = [#tpu.dimension_semantics<parallel>], iteration_bounds = array<i64: 1>, scalar_prefetch = 0 : i64, scratch_operands = 0 : i64, tpu.core_type = #tpu.core_type<tc>, window_params = [{transform_indices = @transform_0, window_bounds = array<i64: 8, 8>}, {pipeline_mode = #tpu.pipeline_mode<synchronous>, transform_indices = @transform_1, window_bounds = array<i64: 8, 128>}, {pipeline_mode = #tpu.pipeline_mode<synchronous>, transform_indices = @transform_2, window_bounds = array<i64: 1, 128>}, {transform_indices = @transform_3, window_bounds = array<i64: 8, 128>}]} {
    %c0 = arith.constant 0 : index
    %c0_0 = arith.constant 0 : index
    %0 = vector.load %arg1[%c0, %c0_0] : memref<8x8xf32, #tpu.memory_space<vmem>>, vector<8x8xf32>
    %c0_1 = arith.constant 0 : index
    %c0_2 = arith.constant 0 : index
    %1 = vector.load %arg2[%c0_1, %c0_2] : memref<8x128xf32, #tpu.memory_space<vmem>>, vector<8x128xf32>
    %cst = arith.constant dense<0.000000e+00> : vector<8x128xf32>
    %2 = tpu.matmul %0, %1, %cst {dimension_numbers = #tpu.dot_dimension_numbers<[1], [0], [0], [1], [0, 0, 1, 1], [], []>} : vector<8x8xf32>, vector<8x128xf32>, vector<8x128xf32> -> vector<8x128xf32>
    %c0_3 = arith.constant 0 : index
    %c0_4 = arith.constant 0 : index
    %3 = vector.load %arg3[%c0_3, %c0_4] : memref<1x128xf32, #tpu.memory_space<vmem>>, vector<1x128xf32>
    %4 = vector.broadcast %3 : vector<1x128xf32> to vector<8x128xf32>
    %5 = arith.addf %2, %4 : vector<8x128xf32>
    %cst_5 = arith.constant 0.000000e+00 : f32
    %6 = vector.broadcast %cst_5 : f32 to vector<8x128xf32>
    %7 = arith.maximumf %5, %6 : vector<8x128xf32>
    %c0_6 = arith.constant 0 : index
    %c0_7 = arith.constant 0 : index
    %8 = vector.load %arg4[%c0_6, %c0_7] : memref<8x128xf32, #tpu.memory_space<vmem>>, vector<8x128xf32>
    tpu.vector_store %arg4[%c0_6, %c0_7], %7 {strides = array<i32>} : memref<8x128xf32, #tpu.memory_space<vmem>>, vector<8x128xf32>,
    return
  }
  func.func @transform_0(%arg0: i32) -> (i32, i32) {
    %c0_i32 = arith.constant 0 : i32
    %c0_i32_0 = arith.constant 0 : i32
    return %arg0, %c0_i32 : i32, i32
  }
  func.func @transform_1(%arg0: i32) -> (i32, i32) {
    %c0_i32 = arith.constant 0 : i32
    %c0_i32_0 = arith.constant 0 : i32
    %c0_i32_1 = arith.constant 0 : i32
    return %c0_i32, %c0_i32_0 : i32, i32
  }
  func.func @transform_2(%arg0: i32) -> (i32, i32) {
    %c0_i32 = arith.constant 0 : i32
    %c0_i32_0 = arith.constant 0 : i32
    %c0_i32_1 = arith.constant 0 : i32
    return %c0_i32, %c0_i32_0 : i32, i32
  }
  func.func @transform_3(%arg0: i32) -> (i32, i32) {
    %c0_i32 = arith.constant 0 : i32
    %c0_i32_0 = arith.constant 0 : i32
    return %arg0, %c0_i32 : i32, i32
  }
}

</mosaic_0001>

<llo_original>
// kernel: tpu_custom_call.1
$region0: #{tpu_custom_call.1}
  #allocation0 [shape = 'u32[]', space=smem, size = 0x4, offset = 0x4, fixed_abs, tag = 'smem constant byte address 0x4 - core index']
  #allocation1 [shape = 'u32[144,128]{1,0:T(1,128)}', space=vmem, size = 0x12000, scoped, tag = 'internal scratch']
  %s0 = inlined_call_operand.hbm [shape: f32[8,8], index: 0, kind: input, shape index: {}]
  %s1 = inlined_call_operand.hbm [shape: f32[8,128], index: 1, kind: input, shape index: {}]
  %s2 = inlined_call_operand.vmem [shape: f32[1,128], index: 2, kind: input, shape index: {}]
  %s3 = inlined_call_operand.hbm [shape: f32[8,128], index: 3, kind: output, shape index: {}]
  %s4 = sld [smem:[#allocation0]]
  $region30: #{tpu_custom_call.1} parent=0
    _
  %s6 = ssub.s32 1, %s4
  %s7 = scalar_select 0, %s6, %s4
  $region1: #{tpu_custom_call.1} parent=0
    #allocation2 [shape = 'u8[4096]{0}', space=vmem, size = 0x1000, scoped, tag = 'input window, operand 0, single buffered']
    #allocation3 [shape = 's32[1]{0}', space=sflag, size = 0x4, scoped, tag = 'scoped memory for tpu_custom_call.1']
    #allocation4 [shape = 's32[1]{0}', space=sflag, size = 0x4, scoped, tag = 'scoped memory for tpu_custom_call.1']
    #allocation5 [shape = 'u8[4096]{0}', space=vmem, size = 0x1000, scoped, tag = 'input window, operand 1, single buffered']
    #allocation6 [shape = 's32[1]{0}', space=sflag, size = 0x4, scoped, tag = 'scoped memory for tpu_custom_call.1']
    #allocation7 [shape = 'u8[4096]{0}', space=vmem, size = 0x1000, scoped, tag = 'output window, operand 0, single buffered']
    %8 = vsyncpa [#allocation3], 0
    %9 = vsyncpa [#allocation6], 0
    %10 = vsyncpa [#allocation4], 0
    // Predicated region
    $region2: #{tpu_custom_call.1} parent=1 // pred_check
      _
    $region3: #{tpu_custom_call.1} parent=1 // pred_check_branch
      %12 = sbr.rel (0) target = $region5
    $region4: #{tpu_custom_call.1} parent=1 // pred_region
      %s14 = ssub.s32 128, 128
      %15 = vsyncadd [#allocation3], %s14
      %s17 = sshll.u32 [#allocation2], 4
      %s18 = int_to_ptr.vmem [resolvable:$true] %s17
      %20 = dma.hbm_to_vmem [thread:$0]  %s0, 128, %s18, [#allocation3]
    $region5: #{tpu_custom_call.1} parent=1 // pred_fallthru
      _
    // Predicated region
    $region6: #{tpu_custom_call.1} parent=1 // pred_check
      _
    $region7: #{tpu_custom_call.1} parent=1 // pred_check_branch
      %22 = sbr.rel (0) target = $region9
    $region8: #{tpu_custom_call.1} parent=1 // pred_region
      %s24 = ssub.s32 128, 128
      %25 = vsyncadd [#allocation6], %s24
      %s27 = sshll.u32 [#allocation5], 4
      %s28 = int_to_ptr.vmem [resolvable:$true] %s27
      %30 = dma.hbm_to_vmem [thread:$0]  %s1, 128, %s28, [#allocation6]
    $region9: #{tpu_custom_call.1} parent=1 // pred_fallthru
      _
    // Predicated region
    $region10: #{tpu_custom_call.1} parent=1 // pred_check
      _
    $region11: #{tpu_custom_call.1} parent=1 // pred_check_branch
      %32 = sbr.rel (0) target = $region13
    $region12: #{tpu_custom_call.1} parent=1 // pred_region
      _
    $region13: #{tpu_custom_call.1} parent=1 // pred_fallthru
      _
    // Predicated region
    $region14: #{tpu_custom_call.1} parent=1 // pred_check
      _
    $region15: #{tpu_custom_call.1} parent=1 // pred_check_branch
      %34 = sbr.rel (0) target = $region17
    $region16: #{tpu_custom_call.1} parent=1 // pred_region
      %35 = dma.done [#allocation3], 128
    $region17: #{tpu_custom_call.1} parent=1 // pred_fallthru
      _
    // Predicated region
    $region18: #{tpu_custom_call.1} parent=1 // pred_check
      _
    $region19: #{tpu_custom_call.1} parent=1 // pred_check_branch
      %37 = sbr.rel (0) target = $region21
    $region20: #{tpu_custom_call.1} parent=1 // pred_region
      %38 = dma.done [#allocation6], 128
    $region21: #{tpu_custom_call.1} parent=1 // pred_fallthru
      _
    %v39 = vld [vmem:[#allocation2] sm:$0xff]
    %v40 = vld [vmem:[#allocation5] sm:$0xff]
    %v41 = vld [vmem:[%s2] sm:$0x1]
    %v43 = vlaneseq
    %v44 = vshrl.u32 %v43, 7
    %v45 = vsub.s32 0, %v44
    %v46 = vrot.slane %v41, %v45
    %vm48 = vcmask 64512
    %v50 = vsel %vm48, %v39, 0
    %52 = vmatprep.subr.mxu0 0.0
    %53 = vmatpush1.msra.mxu0 %v40
    %54 = vmatprep.subr.mxu0 0.0
    %55 = vmatpush1.msra.mxu0 0.0
    %56 = vmatprep.subr.mxu0 0.0
    %57 = vmatpush1.msra.mxu0 0.0
    %58 = vmatprep.subr.mxu0 0.0
    %59 = vmatpush1.msra.mxu0 0.0
    %60 = vmatprep.subr.mxu0 0.0
    %61 = vmatpush1.msra.mxu0 0.0
    %62 = vmatprep.subr.mxu0 0.0
    %63 = vmatpush1.msra.mxu0 0.0
    %64 = vmatprep.subr.mxu0 0.0
    %65 = vmatpush1.msra.mxu0 0.0
    %66 = vmatprep.subr.mxu0 0.0
    %67 = vmatpush1.msra.mxu0 0.0
    %68 = vmatprep.subr.mxu0 0.0
    %69 = vmatpush1.msra.mxu0 0.0
    %70 = vmatprep.subr.mxu0 0.0
    %71 = vmatpush1.msra.mxu0 0.0
    %72 = vmatprep.subr.mxu0 0.0
    %73 = vmatpush1.msra.mxu0 0.0
    %74 = vmatprep.subr.mxu0 0.0
    %75 = vmatpush1.msra.mxu0 0.0
    %76 = vmatprep.subr.mxu0 0.0
    %77 = vmatpush1.msra.mxu0 0.0
    %78 = vmatprep.subr.mxu0 0.0
    %79 = vmatpush1.msra.mxu0 0.0
    %80 = vmatprep.subr.mxu0 0.0
    %81 = vmatpush1.msra.mxu0 0.0
    %82 = vmatprep.subr.mxu0 0.0
    %83 = vmatpush1.msra.mxu0 0.0
    %84 = vmatprep.subr.mxu0 0.0
    %85 = vmatpush1.msra.mxu0 0.0
    %86 = vmatprep.subr.mxu0 0.0
    %87 = vmatpush1.msra.mxu0 0.0
    %88 = vmatprep.subr.mxu0 0.0
    %89 = vmatpush1.msra.mxu0 0.0
    %90 = vmatprep.subr.mxu0 0.0
    %91 = vmatpush1.msra.mxu0 0.0
    %92 = vmatprep.subr.mxu0 0.0
    %93 = vmatpush1.msra.mxu0 0.0
    %94 = vmatprep.subr.mxu0 0.0
    %95 = vmatpush1.msra.mxu0 0.0
    %96 = vmatprep.subr.mxu0 0.0
    %97 = vmatpush1.msra.mxu0 0.0
    %98 = vmatprep.subr.mxu0 0.0
    %99 = vmatpush1.msra.mxu0 0.0
    %100 = vmatprep.subr.mxu0 0.0
    %101 = vmatpush1.msra.mxu0 0.0
    %102 = vmatprep.subr.mxu0 0.0
    %103 = vmatpush1.msra.mxu0 0.0
    %104 = vmatprep.subr.mxu0 0.0
    %105 = vmatpush1.msra.mxu0 0.0
    %106 = vmatprep.subr.mxu0 0.0
    %107 = vmatpush1.msra.mxu0 0.0
    %108 = vmatprep.subr.mxu0 0.0
    %109 = vmatpush1.msra.mxu0 0.0
    %110 = vmatprep.subr.mxu0 0.0
    %111 = vmatpush1.msra.mxu0 0.0
    %112 = vmatprep.subr.mxu0 0.0
    %113 = vmatpush1.msra.mxu0 0.0
    %114 = vmatprep.subr.mxu0 0.0
    %115 = vmatpush1.msra.mxu0 0.0
    %116 = vmatprep.mubr.f32.mxu0 0.0
    %117 = vmatmul.mubr.f32.gmra.mrb[0].mxu0 %v50
    %v118 = vpop.f32.mrb[0].mxu0
    %v119 = vadd.f32 %v46, %v118
    %v120 = vpop.f32.mrb[0].mxu0
    %121 = vdwg.mxu0
    %v122 = vmax.f32 %v119, 0.0
    %123 = vst [vmem:[#allocation7] sm:$0xff] %v122
    // Predicated region
    $region22: #{tpu_custom_call.1} parent=1 // pred_check
      _
    $region23: #{tpu_custom_call.1} parent=1 // pred_check_branch
      %125 = sbr.rel (0) target = $region25
    $region24: #{tpu_custom_call.1} parent=1 // pred_region
      %s127 = ssub.s32 128, 128
      %128 = vsyncadd [#allocation4], %s127
      %s130 = sshll.u32 [#allocation7], 4
      %s131 = int_to_ptr.vmem [resolvable:$true] %s130
      %133 = dma.vmem_to_hbm [thread:$0]  %s131, 128, %s3, [#allocation4]
    $region25: #{tpu_custom_call.1} parent=1 // pred_fallthru
      _
    // Predicated region
    $region26: #{tpu_custom_call.1} parent=1 // pred_check
      _
    $region27: #{tpu_custom_call.1} parent=1 // pred_check_branch
      %135 = sbr.rel (0) target = $region29
    $region28: #{tpu_custom_call.1} parent=1 // pred_region
      %136 = dma.done [#allocation4], 128
    $region29: #{tpu_custom_call.1} parent=1 // pred_fallthru
      _
    %137 = vsyncpa [#allocation3], 1
    %138 = vsyncpa [#allocation6], 1
    %139 = vsyncpa [#allocation4], 1

</llo_original>
